<compile_context>
chip_gen: v6e
topology: v6e:2x2x1
jax: 0.10.0
libtpu: 0.0.40
codegen_flags: <defaults>
</compile_context>

<pallas_src>
import math

import jax
import jax.numpy as jnp
from jax.experimental import pallas as pl
from jax.experimental.pallas import tpu as pltpu


NEG_SLOPE = 0.01
LANE = 128   # lane width (last dim)
SUB = 8      # sublane width (second-to-last dim)


def _leaky_relu(x):
    # For slope < 1 this is exactly leaky_relu; one mul + one max on the VPU.
    return jnp.maximum(x, NEG_SLOPE * x)


def _round_up(n, m):
    return ((n + m - 1) // m) * m


def _pad2(a, shape):
    """Zero-pad a 2-D array up to `shape`."""
    return jnp.pad(a, ((0, shape[0] - a.shape[0]), (0, shape[1] - a.shape[1])))


# ---------------------------------------------------------------------------
# Kernel
# ---------------------------------------------------------------------------
def ann_cc_kernel(x_ref, w_in_ref, b_in_ref, w_h_ref, b_h_ref,
                  w_out_ref, b_out_ref, o_ref):
    # One batch tile per grid step; all weights/biases are VMEM-resident
    # (constant index_map). MXU operands follow the weight dtype (f32 or
    # bf16); accumulation is always f32; biases/activations stay f32.
    w_in = w_in_ref[...]
    x = x_ref[...].astype(w_in.dtype)

    # input_layer + leaky_relu
    h = jnp.dot(x, w_in, preferred_element_type=jnp.float32)
    h = _leaky_relu(h + b_in_ref[...])

    # hidden_layer applied three times (weight reuse), each with leaky_relu.
    w_h = w_h_ref[...]
    b_h = b_h_ref[...]
    for _ in range(3):
        h = jnp.dot(h.astype(w_h.dtype), w_h, preferred_element_type=jnp.float32)
        h = _leaky_relu(h + b_h)

    # output_layer (no activation); lane-dense (128-padded) store.
    w_out = w_out_ref[...]
    out = jnp.dot(h.astype(w_out.dtype), w_out, preferred_element_type=jnp.float32)
    o_ref[...] = (out + b_out_ref[...]).astype(o_ref.dtype)


# ---------------------------------------------------------------------------
# One-time parameter preprocessing (hoisted out of the forward call)
# ---------------------------------------------------------------------------
def prepare_params(params, *, compute_dtype=None):
    """Transpose PyTorch-convention weights to (in, out), zero-pad the output
    feature dims to lane (128) alignment and optionally cast MXU operands to
    bf16. Call once at load time; reuse the result for every forward."""
    in_neuron = params["input_layer.weight"].shape[1]
    hidden_neuron = params["hidden_layer.weight"].shape[0]
    out_neuron = params["output_layer.weight"].shape[0]

    hid_p = _round_up(hidden_neuron, LANE)
    out_p = _round_up(out_neuron, LANE)

    if compute_dtype is None:
        # bf16 MXU operands only pay off once the hidden GEMMs are MXU-bound
        # (v6e/v7x MXU native input is bf16); tiny nets stay f32 / exact.
        compute_dtype = jnp.bfloat16 if hid_p >= 512 else jnp.float32

    # Zero padding keeps the real output columns exact: padded hidden lanes
    # get 0*x + 0 bias, and leaky_relu(0) == 0, so they never contaminate
    # real lanes.
    w_in = _pad2(params["input_layer.weight"].T, (in_neuron, hid_p)).astype(compute_dtype)
    b_in = _pad2(params["input_layer.bias"][None, :], (1, hid_p)).astype(jnp.float32)
    w_h = _pad2(params["hidden_layer.weight"].T, (hid_p, hid_p)).astype(compute_dtype)
    b_h = _pad2(params["hidden_layer.bias"][None, :], (1, hid_p)).astype(jnp.float32)
    w_out = _pad2(params["output_layer.weight"].T, (hid_p, out_p)).astype(compute_dtype)
    b_out = _pad2(params["output_layer.bias"][None, :], (1, out_p)).astype(jnp.float32)

    consts = (w_in, b_in, w_h, b_h, w_out, b_out)
    const_bytes = sum(int(a.size) * a.dtype.itemsize for a in consts)
    return {
        "consts": consts,
        "const_bytes": const_bytes,
        "dims": (in_neuron, hidden_neuron, out_neuron, hid_p, out_p),
    }


def _choose_tile(batch, in_dim, hid_p, out_p, const_bytes):
    """Pick the batch tile (rows) and an explicit scoped-VMEM limit."""
    # Per-row activation VMEM: double-buffered x / out tiles plus ~2 live
    # copies of the hidden activations (compiler temporaries).
    act_row_bytes = 4 * (2 * in_dim + 2 * out_p + 2 * hid_p)
    budget = 24 << 20                       # conservative across v5e/v6e/v7x
    avail = max(budget - 2 * const_bytes, 1 << 20)
    tb_cap = max(SUB, min(2048, (avail // act_row_bytes) // SUB * SUB))

    # Aim for >= 4 grid steps so v7x's two TensorCores ("parallel" axis) each
    # get at least two pipelined steps; never exceed the (rounded-up) batch.
    tb_target = _round_up(max(1, pl.cdiv(batch, 4)), SUB)
    tb = max(SUB, min(tb_cap, tb_target, _round_up(batch, SUB)))

    # Explicit limit: worst case double-buffered constants + activations,
    # floored at the v6e/v7x scoped default, capped at v7x physical VMEM.
    vmem_limit = 2 * const_bytes + tb * act_row_bytes + (8 << 20)
    vmem_limit = int(min(max(vmem_limit, 32 << 20), 64 << 20))
    return tb, vmem_limit


# ---------------------------------------------------------------------------
# Forward wrapper
# ---------------------------------------------------------------------------
def ann_cc_forward(x, prepared):
    """x: (B, in_neuron) f32. prepared: output of prepare_params()."""
    in_neuron, _, out_neuron, hid_p, out_p = prepared["dims"]
    w_in, b_in, w_h, b_h, w_out, b_out = prepared["consts"]

    batch, in_dim = x.shape
    assert in_dim == in_neuron, (in_dim, in_neuron)
    x = x.astype(jnp.float32)               # no-op (no copy) if already f32

    tb, vmem_limit = _choose_tile(batch, in_dim, hid_p, out_p,
                                  prepared["const_bytes"])
    grid = (pl.cdiv(batch, tb),)            # ragged last block handled by Pallas

    flops = 2 * batch * (in_dim * hid_p + 3 * hid_p * hid_p + hid_p * out_p)
    bytes_accessed = 4 * batch * (in_dim + out_p) + prepared["const_bytes"]
    cost = pl.CostEstimate(flops=flops, transcendentals=0,
                           bytes_accessed=bytes_accessed)

    def run(single_buffer_constants):
        def const_spec(a):
            # Constant index_map => block never changes => stays in VMEM.
            if single_buffer_constants:
                return pl.BlockSpec(a.shape, lambda i: (0, 0),
                                    pipeline_mode=pl.Buffered(1))
            return pl.BlockSpec(a.shape, lambda i: (0, 0))

        return pl.pallas_call(
            ann_cc_kernel,
            out_shape=jax.ShapeDtypeStruct((batch, out_p), jnp.float32),
            grid=grid,
            in_specs=[
                pl.BlockSpec((tb, in_dim), lambda i: (i, 0)),  # x: batch-tiled
                const_spec(w_in), const_spec(b_in),
                const_spec(w_h), const_spec(b_h),
                const_spec(w_out), const_spec(b_out),
            ],
            out_specs=pl.BlockSpec((tb, out_p), lambda i: (i, 0)),
            compiler_params=pltpu.CompilerParams(
                dimension_semantics=("parallel",),
                vmem_limit_bytes=vmem_limit),
            cost_estimate=cost,
        )(x, w_in, b_in, w_h, b_h, w_out, b_out)

    try:
        # Preferred: single-buffered resident constants (halves weight VMEM).
        out_padded = run(True)
    except Exception:
        # Fallback if this runtime rejects pl.Buffered(1) on pallas_call specs.
        out_padded = run(False)

    # Only the lane-padding columns are stripped (batch is already exact).
    return out_padded[:, :out_neuron]


# ---------------------------------------------------------------------------
# Init / reference / test
# ---------------------------------------------------------------------------
def init_params(key, in_neuron, hidden_neuron, out_neuron):
    """Deterministic init mimicking PyTorch nn.Linear default
    (U[-1/sqrt(fan_in), 1/sqrt(fan_in)])."""
    ks = jax.random.split(key, 6)

    def linear(kw, kb, fan_in, fan_out):
        bound = 1.0 / math.sqrt(fan_in)
        w = jax.random.uniform(kw, (fan_out, fan_in), jnp.float32, -bound, bound)
        b = jax.random.uniform(kb, (fan_out,), jnp.float32, -bound, bound)
        return w, b

    w_in, b_in = linear(ks[0], ks[1], in_neuron, hidden_neuron)
    w_h, b_h = linear(ks[2], ks[3], hidden_neuron, hidden_neuron)
    w_out, b_out = linear(ks[4], ks[5], hidden_neuron, out_neuron)
    return {
        "input_layer.weight": w_in, "input_layer.bias": b_in,
        "hidden_layer.weight": w_h, "hidden_layer.bias": b_h,
        "output_layer.weight": w_out, "output_layer.bias": b_out,
    }


def _reference(x, params):
    """Pure-JAX reference of the PyTorch forward."""
    def lin(h, w, b):
        return h @ w.T + b
    h = _leaky_relu(lin(x, params["input_layer.weight"],
                        params["input_layer.bias"]))
    for _ in range(3):
        h = _leaky_relu(lin(h, params["hidden_layer.weight"],
                            params["hidden_layer.bias"]))
    return lin(h, params["output_layer.weight"], params["output_layer.bias"])


if __name__ == "__main__":
    key = jax.random.PRNGKey(0)
    k_x, k_p = jax.random.split(key)

    batch, in_neuron, hidden_neuron, out_neuron = 8, 4, 32, 2
    x = jax.random.normal(k_x, (batch, in_neuron), jnp.float32)
    params = init_params(k_p, in_neuron, hidden_neuron, out_neuron)
    prepared = prepare_params(params)     # one-time weight prep, reused below

    out = jax.block_until_ready(ann_cc_forward(x, prepared))
    ref = _reference(x, params)
    assert out.shape == (batch, out_neuron)
    assert jnp.allclose(out, ref, atol=1e-5, rtol=1e-5)

    # Ragged batch-tiled path: B=1000 -> tb=256, grid=4, last block overhangs.
    x_big = jax.random.normal(k_x, (1000, in_neuron), jnp.float32)
    out_big = jax.block_until_ready(ann_cc_forward(x_big, prepared))
    ref_big = _reference(x_big, params)
    assert out_big.shape == (1000, out_neuron)
    assert jnp.allclose(out_big, ref_big, atol=1e-5, rtol=1e-5)

    print("KERNEL_OK")
</pallas_src>

<mosaic_0001>
module attributes {stable_mosaic.version = 11 : i64} {
  func.func @ann_cc_kernel(%arg0: i32, %arg1: memref<8x4xf32, #tpu.memory_space<vmem>>, %arg2: memref<4x128xf32, #tpu.memory_space<vmem>>, %arg3: memref<1x128xf32, #tpu.memory_space<vmem>>, %arg4: memref<128x128xf32, #tpu.memory_space<vmem>>, %arg5: memref<1x128xf32, #tpu.memory_space<vmem>>, %arg6: memref<128x128xf32, #tpu.memory_space<vmem>>, %arg7: memref<1x128xf32, #tpu.memory_space<vmem>>, %arg8: memref<8x128xf32, #tpu.memory_space<vmem>>) attributes {dimension_semantics = [#tpu.dimension_semantics<parallel>], iteration_bounds = array<i64: 1>, scalar_prefetch = 0 : i64, scratch_operands = 0 : i64, tpu.core_type = #tpu.core_type<tc>, window_params = [{transform_indices = @transform_0, window_bounds = array<i64: 8, 4>}, {pipeline_mode = #tpu.pipeline_mode<synchronous>, transform_indices = @transform_1, window_bounds = array<i64: 4, 128>}, {pipeline_mode = #tpu.pipeline_mode<synchronous>, transform_indices = @transform_2, window_bounds = array<i64: 1, 128>}, {pipeline_mode = #tpu.pipeline_mode<synchronous>, transform_indices = @transform_3, window_bounds = array<i64: 128, 128>}, {pipeline_mode = #tpu.pipeline_mode<synchronous>, transform_indices = @transform_4, window_bounds = array<i64: 1, 128>}, {pipeline_mode = #tpu.pipeline_mode<synchronous>, transform_indices = @transform_5, window_bounds = array<i64: 128, 128>}, {pipeline_mode = #tpu.pipeline_mode<synchronous>, transform_indices = @transform_6, window_bounds = array<i64: 1, 128>}, {transform_indices = @transform_7, window_bounds = array<i64: 8, 128>}]} {
    %c0 = arith.constant 0 : index
    %c0_0 = arith.constant 0 : index
    %0 = vector.load %arg2[%c0, %c0_0] : memref<4x128xf32, #tpu.memory_space<vmem>>, vector<4x128xf32>
    %c0_1 = arith.constant 0 : index
    %c0_2 = arith.constant 0 : index
    %1 = vector.load %arg1[%c0_1, %c0_2] : memref<8x4xf32, #tpu.memory_space<vmem>>, vector<8x4xf32>
    %cst = arith.constant dense<0.000000e+00> : vector<8x128xf32>
    %2 = tpu.matmul %1, %0, %cst {dimension_numbers = #tpu.dot_dimension_numbers<[1], [0], [0], [1], [0, 0, 1, 1], [], []>} : vector<8x4xf32>, vector<4x128xf32>, vector<8x128xf32> -> vector<8x128xf32>
    %c0_3 = arith.constant 0 : index
    %c0_4 = arith.constant 0 : index
    %3 = vector.load %arg3[%c0_3, %c0_4] : memref<1x128xf32, #tpu.memory_space<vmem>>, vector<1x128xf32>
    %4 = vector.broadcast %3 : vector<1x128xf32> to vector<8x128xf32>
    %5 = arith.addf %2, %4 : vector<8x128xf32>
    %cst_5 = arith.constant 0.00999999977 : f32
    %6 = vector.broadcast %cst_5 : f32 to vector<8x128xf32>
    %7 = arith.mulf %6, %5 : vector<8x128xf32>
    %8 = arith.maximumf %5, %7 : vector<8x128xf32>
    %c0_6 = arith.constant 0 : index
    %c0_7 = arith.constant 0 : index
    %9 = vector.load %arg4[%c0_6, %c0_7] : memref<128x128xf32, #tpu.memory_space<vmem>>, vector<128x128xf32>
    %c0_8 = arith.constant 0 : index
    %c0_9 = arith.constant 0 : index
    %10 = vector.load %arg5[%c0_8, %c0_9] : memref<1x128xf32, #tpu.memory_space<vmem>>, vector<1x128xf32>
    %cst_10 = arith.constant dense<0.000000e+00> : vector<8x128xf32>
    %11 = tpu.matmul %8, %9, %cst_10 {dimension_numbers = #tpu.dot_dimension_numbers<[1], [0], [0], [1], [0, 0, 1, 1], [], []>} : vector<8x128xf32>, vector<128x128xf32>, vector<8x128xf32> -> vector<8x128xf32>
    %12 = vector.broadcast %10 : vector<1x128xf32> to vector<8x128xf32>
    %13 = arith.addf %11, %12 : vector<8x128xf32>
    %cst_11 = arith.constant 0.00999999977 : f32
    %14 = vector.broadcast %cst_11 : f32 to vector<8x128xf32>
    %15 = arith.mulf %14, %13 : vector<8x128xf32>
    %16 = arith.maximumf %13, %15 : vector<8x128xf32>
    %cst_12 = arith.constant dense<0.000000e+00> : vector<8x128xf32>
    %17 = tpu.matmul %16, %9, %cst_12 {dimension_numbers = #tpu.dot_dimension_numbers<[1], [0], [0], [1], [0, 0, 1, 1], [], []>} : vector<8x128xf32>, vector<128x128xf32>, vector<8x128xf32> -> vector<8x128xf32>
    %18 = vector.broadcast %10 : vector<1x128xf32> to vector<8x128xf32>
    %19 = arith.addf %17, %18 : vector<8x128xf32>
    %cst_13 = arith.constant 0.00999999977 : f32
    %20 = vector.broadcast %cst_13 : f32 to vector<8x128xf32>
    %21 = arith.mulf %20, %19 : vector<8x128xf32>
    %22 = arith.maximumf %19, %21 : vector<8x128xf32>
    %cst_14 = arith.constant dense<0.000000e+00> : vector<8x128xf32>
    %23 = tpu.matmul %22, %9, %cst_14 {dimension_numbers = #tpu.dot_dimension_numbers<[1], [0], [0], [1], [0, 0, 1, 1], [], []>} : vector<8x128xf32>, vector<128x128xf32>, vector<8x128xf32> -> vector<8x128xf32>
    %24 = vector.broadcast %10 : vector<1x128xf32> to vector<8x128xf32>
    %25 = arith.addf %23, %24 : vector<8x128xf32>
    %cst_15 = arith.constant 0.00999999977 : f32
    %26 = vector.broadcast %cst_15 : f32 to vector<8x128xf32>
    %27 = arith.mulf %26, %25 : vector<8x128xf32>
    %28 = arith.maximumf %25, %27 : vector<8x128xf32>
    %c0_16 = arith.constant 0 : index
    %c0_17 = arith.constant 0 : index
    %29 = vector.load %arg6[%c0_16, %c0_17] : memref<128x128xf32, #tpu.memory_space<vmem>>, vector<128x128xf32>
    %cst_18 = arith.constant dense<0.000000e+00> : vector<8x128xf32>
    %30 = tpu.matmul %28, %29, %cst_18 {dimension_numbers = #tpu.dot_dimension_numbers<[1], [0], [0], [1], [0, 0, 1, 1], [], []>} : vector<8x128xf32>, vector<128x128xf32>, vector<8x128xf32> -> vector<8x128xf32>
    %c0_19 = arith.constant 0 : index
    %c0_20 = arith.constant 0 : index
    %31 = vector.load %arg7[%c0_19, %c0_20] : memref<1x128xf32, #tpu.memory_space<vmem>>, vector<1x128xf32>
    %32 = vector.broadcast %31 : vector<1x128xf32> to vector<8x128xf32>
    %33 = arith.addf %30, %32 : vector<8x128xf32>
    %c0_21 = arith.constant 0 : index
    %c0_22 = arith.constant 0 : index
    %34 = vector.load %arg8[%c0_21, %c0_22] : memref<8x128xf32, #tpu.memory_space<vmem>>, vector<8x128xf32>
    tpu.vector_store %arg8[%c0_21, %c0_22], %33 {strides = array<i32>} : memref<8x128xf32, #tpu.memory_space<vmem>>, vector<8x128xf32>,
    return
  }
  func.func @transform_0(%arg0: i32) -> (i32, i32) {
    %c0_i32 = arith.constant 0 : i32
    %c0_i32_0 = arith.constant 0 : i32
    return %arg0, %c0_i32 : i32, i32
  }
  func.func @transform_1(%arg0: i32) -> (i32, i32) {
    %c0_i32 = arith.constant 0 : i32
    %c0_i32_0 = arith.constant 0 : i32
    %c0_i32_1 = arith.constant 0 : i32
    return %c0_i32, %c0_i32_0 : i32, i32
  }
  func.func @transform_2(%arg0: i32) -> (i32, i32) {
    %c0_i32 = arith.constant 0 : i32
    %c0_i32_0 = arith.constant 0 : i32
    %c0_i32_1 = arith.constant 0 : i32
    return %c0_i32, %c0_i32_0 : i32, i32
  }
  func.func @transform_3(%arg0: i32) -> (i32, i32) {
    %c0_i32 = arith.constant 0 : i32
    %c0_i32_0 = arith.constant 0 : i32
    %c0_i32_1 = arith.constant 0 : i32
    return %c0_i32, %c0_i32_0 : i32, i32
  }
  func.func @transform_4(%arg0: i32) -> (i32, i32) {
    %c0_i32 = arith.constant 0 : i32
    %c0_i32_0 = arith.constant 0 : i32
    %c0_i32_1 = arith.constant 0 : i32
    return %c0_i32, %c0_i32_0 : i32, i32
  }
  func.func @transform_5(%arg0: i32) -> (i32, i32) {
    %c0_i32 = arith.constant 0 : i32
    %c0_i32_0 = arith.constant 0 : i32
    %c0_i32_1 = arith.constant 0 : i32
    return %c0_i32, %c0_i32_0 : i32, i32
  }
  func.func @transform_6(%arg0: i32) -> (i32, i32) {
    %c0_i32 = arith.constant 0 : i32
    %c0_i32_0 = arith.constant 0 : i32
    %c0_i32_1 = arith.constant 0 : i32
    return %c0_i32, %c0_i32_0 : i32, i32
  }
  func.func @transform_7(%arg0: i32) -> (i32, i32) {
    %c0_i32 = arith.constant 0 : i32
    %c0_i32_0 = arith.constant 0 : i32
    return %arg0, %c0_i32 : i32, i32
  }
}

module attributes {stable_mosaic.version = 11 : i64} {
  func.func @ann_cc_kernel(%arg0: i32, %arg1: memref<8x4xf32, #tpu.memory_space<vmem>>, %arg2: memref<4x128xf32, #tpu.memory_space<vmem>>, %arg3: memref<1x128xf32, #tpu.memory_space<vmem>>, %arg4: memref<128x128xf32, #tpu.memory_space<vmem>>, %arg5: memref<1x128xf32, #tpu.memory_space<vmem>>, %arg6: memref<128x128xf32, #tpu.memory_space<vmem>>, %arg7: memref<1x128xf32, #tpu.memory_space<vmem>>, %arg8: memref<8x128xf32, #tpu.memory_space<vmem>>) attributes {dimension_semantics = [#tpu.dimension_semantics<parallel>], iteration_bounds = array<i64: 1>, scalar_prefetch = 0 : i64, scratch_operands = 0 : i64, tpu.core_type = #tpu.core_type<tc>, window_params = [{transform_indices = @transform_0, window_bounds = array<i64: 8, 4>}, {pipeline_mode = #tpu.pipeline_mode<synchronous>, transform_indices = @transform_1, window_bounds = array<i64: 4, 128>}, {pipeline_mode = #tpu.pipeline_mode<synchronous>, transform_indices = @transform_2, window_bounds = array<i64: 1, 128>}, {pipeline_mode = #tpu.pipeline_mode<synchronous>, transform_indices = @transform_3, window_bounds = array<i64: 128, 128>}, {pipeline_mode = #tpu.pipeline_mode<synchronous>, transform_indices = @transform_4, window_bounds = array<i64: 1, 128>}, {pipeline_mode = #tpu.pipeline_mode<synchronous>, transform_indices = @transform_5, window_bounds = array<i64: 128, 128>}, {pipeline_mode = #tpu.pipeline_mode<synchronous>, transform_indices = @transform_6, window_bounds = array<i64: 1, 128>}, {transform_indices = @transform_7, window_bounds = array<i64: 8, 128>}]} {
    %c0 = arith.constant 0 : index
    %c0_0 = arith.constant 0 : index
    %0 = vector.load %arg2[%c0, %c0_0] : memref<4x128xf32, #tpu.memory_space<vmem>>, vector<4x128xf32>
    %c0_1 = arith.constant 0 : index
    %c0_2 = arith.constant 0 : index
    %1 = vector.load %arg1[%c0_1, %c0_2] : memref<8x4xf32, #tpu.memory_space<vmem>>, vector<8x4xf32>
    %cst = arith.constant dense<0.000000e+00> : vector<8x128xf32>
    %2 = tpu.matmul %1, %0, %cst {dimension_numbers = #tpu.dot_dimension_numbers<[1], [0], [0], [1], [0, 0, 1, 1], [], []>} : vector<8x4xf32>, vector<4x128xf32>, vector<8x128xf32> -> vector<8x128xf32>
    %c0_3 = arith.constant 0 : index
    %c0_4 = arith.constant 0 : index
    %3 = vector.load %arg3[%c0_3, %c0_4] : memref<1x128xf32, #tpu.memory_space<vmem>>, vector<1x128xf32>
    %4 = vector.broadcast %3 : vector<1x128xf32> to vector<8x128xf32>
    %5 = arith.addf %2, %4 : vector<8x128xf32>
    %cst_5 = arith.constant 0.00999999977 : f32
    %6 = vector.broadcast %cst_5 : f32 to vector<8x128xf32>
    %7 = arith.mulf %6, %5 : vector<8x128xf32>
    %8 = arith.maximumf %5, %7 : vector<8x128xf32>
    %c0_6 = arith.constant 0 : index
    %c0_7 = arith.constant 0 : index
    %9 = vector.load %arg4[%c0_6, %c0_7] : memref<128x128xf32, #tpu.memory_space<vmem>>, vector<128x128xf32>
    %c0_8 = arith.constant 0 : index
    %c0_9 = arith.constant 0 : index
    %10 = vector.load %arg5[%c0_8, %c0_9] : memref<1x128xf32, #tpu.memory_space<vmem>>, vector<1x128xf32>
    %cst_10 = arith.constant dense<0.000000e+00> : vector<8x128xf32>
    %11 = tpu.matmul %8, %9, %cst_10 {dimension_numbers = #tpu.dot_dimension_numbers<[1], [0], [0], [1], [0, 0, 1, 1], [], []>} : vector<8x128xf32>, vector<128x128xf32>, vector<8x128xf32> -> vector<8x128xf32>
    %12 = vector.broadcast %10 : vector<1x128xf32> to vector<8x128xf32>
    %13 = arith.addf %11, %12 : vector<8x128xf32>
    %cst_11 = arith.constant 0.00999999977 : f32
    %14 = vector.broadcast %cst_11 : f32 to vector<8x128xf32>
    %15 = arith.mulf %14, %13 : vector<8x128xf32>
    %16 = arith.maximumf %13, %15 : vector<8x128xf32>
    %cst_12 = arith.constant dense<0.000000e+00> : vector<8x128xf32>
    %17 = tpu.matmul %16, %9, %cst_12 {dimension_numbers = #tpu.dot_dimension_numbers<[1], [0], [0], [1], [0, 0, 1, 1], [], []>} : vector<8x128xf32>, vector<128x128xf32>, vector<8x128xf32> -> vector<8x128xf32>
    %18 = vector.broadcast %10 : vector<1x128xf32> to vector<8x128xf32>
    %19 = arith.addf %17, %18 : vector<8x128xf32>
    %cst_13 = arith.constant 0.00999999977 : f32
    %20 = vector.broadcast %cst_13 : f32 to vector<8x128xf32>
    %21 = arith.mulf %20, %19 : vector<8x128xf32>
    %22 = arith.maximumf %19, %21 : vector<8x128xf32>
    %cst_14 = arith.constant dense<0.000000e+00> : vector<8x128xf32>
    %23 = tpu.matmul %22, %9, %cst_14 {dimension_numbers = #tpu.dot_dimension_numbers<[1], [0], [0], [1], [0, 0, 1, 1], [], []>} : vector<8x128xf32>, vector<128x128xf32>, vector<8x128xf32> -> vector<8x128xf32>
    %24 = vector.broadcast %10 : vector<1x128xf32> to vector<8x128xf32>
    %25 = arith.addf %23, %24 : vector<8x128xf32>
    %cst_15 = arith.constant 0.00999999977 : f32
    %26 = vector.broadcast %cst_15 : f32 to vector<8x128xf32>
    %27 = arith.mulf %26, %25 : vector<8x128xf32>
    %28 = arith.maximumf %25, %27 : vector<8x128xf32>
    %c0_16 = arith.constant 0 : index
    %c0_17 = arith.constant 0 : index
    %29 = vector.load %arg6[%c0_16, %c0_17] : memref<128x128xf32, #tpu.memory_space<vmem>>, vector<128x128xf32>
    %cst_18 = arith.constant dense<0.000000e+00> : vector<8x128xf32>
    %30 = tpu.matmul %28, %29, %cst_18 {dimension_numbers = #tpu.dot_dimension_numbers<[1], [0], [0], [1], [0, 0, 1, 1], [], []>} : vector<8x128xf32>, vector<128x128xf32>, vector<8x128xf32> -> vector<8x128xf32>
    %c0_19 = arith.constant 0 : index
    %c0_20 = arith.constant 0 : index
    %31 = vector.load %arg7[%c0_19, %c0_20] : memref<1x128xf32, #tpu.memory_space<vmem>>, vector<1x128xf32>
    %32 = vector.broadcast %31 : vector<1x128xf32> to vector<8x128xf32>
    %33 = arith.addf %30, %32 : vector<8x128xf32>
    %c0_21 = arith.constant 0 : index
    %c0_22 = arith.constant 0 : index
    %34 = vector.load %arg8[%c0_21, %c0_22] : memref<8x128xf32, #tpu.memory_space<vmem>>, vector<8x128xf32>
    tpu.vector_store %arg8[%c0_21, %c0_22], %33 {strides = array<i32>} : memref<8x128xf32, #tpu.memory_space<vmem>>, vector<8x128xf32>,
    return
  }
  func.func @transform_0(%arg0: i32) -> (i32, i32) {
    %c0_i32 = arith.constant 0 : i32
    %c0_i32_0 = arith.constant 0 : i32
    return %arg0, %c0_i32 : i32, i32
  }
  func.func @transform_1(%arg0: i32) -> (i32, i32) {
    %c0_i32 = arith.constant 0 : i32
    %c0_i32_0 = arith.constant 0 : i32
    %c0_i32_1 = arith.constant 0 : i32
    return %c0_i32, %c0_i32_0 : i32, i32
  }
  func.func @transform_2(%arg0: i32) -> (i32, i32) {
    %c0_i32 = arith.constant 0 : i32
    %c0_i32_0 = arith.constant 0 : i32
    %c0_i32_1 = arith.constant 0 : i32
    return %c0_i32, %c0_i32_0 : i32, i32
  }
  func.func @transform_3(%arg0: i32) -> (i32, i32) {
    %c0_i32 = arith.constant 0 : i32
    %c0_i32_0 = arith.constant 0 : i32
    %c0_i32_1 = arith.constant 0 : i32
    return %c0_i32, %c0_i32_0 : i32, i32
  }
  func.func @transform_4(%arg0: i32) -> (i32, i32) {
    %c0_i32 = arith.constant 0 : i32
    %c0_i32_0 = arith.constant 0 : i32
    %c0_i32_1 = arith.constant 0 : i32
    return %c0_i32, %c0_i32_0 : i32, i32
  }
  func.func @transform_5(%arg0: i32) -> (i32, i32) {
    %c0_i32 = arith.constant 0 : i32
    %c0_i32_0 = arith.constant 0 : i32
    %c0_i32_1 = arith.constant 0 : i32
    return %c0_i32, %c0_i32_0 : i32, i32
  }
  func.func @transform_6(%arg0: i32) -> (i32, i32) {
    %c0_i32 = arith.constant 0 : i32
    %c0_i32_0 = arith.constant 0 : i32
    %c0_i32_1 = arith.constant 0 : i32
    return %c0_i32, %c0_i32_0 : i32, i32
  }
  func.func @transform_7(%arg0: i32) -> (i32, i32) {
    %c0_i32 = arith.constant 0 : i32
    %c0_i32_0 = arith.constant 0 : i32
    return %arg0, %c0_i32 : i32, i32
  }
}

</mosaic_0001>

<llo_original>
// kernel: tpu_custom_call.1
$region0: #{tpu_custom_call.1}
  #allocation0 [shape = 'u32[]', space=smem, size = 0x4, offset = 0x4, fixed_abs, tag = 'smem constant byte address 0x4 - core index']
  #allocation1 [shape = 'u32[144,128]{1,0:T(1,128)}', space=vmem, size = 0x12000, scoped, tag = 'internal scratch']
  %s0 = inlined_call_operand.vmem [shape: f32[8,4], index: 0, kind: input, shape index: {}]
  %s1 = inlined_call_operand.vmem [shape: f32[4,128], index: 1, kind: input, shape index: {}]
  %s2 = inlined_call_operand.vmem [shape: f32[1,128], index: 2, kind: input, shape index: {}]
  %s3 = inlined_call_operand.hbm [shape: f32[128,128], index: 3, kind: input, shape index: {}]
  %s4 = inlined_call_operand.vmem [shape: f32[1,128], index: 4, kind: input, shape index: {}]
  %s5 = inlined_call_operand.hbm [shape: f32[128,128], index: 5, kind: input, shape index: {}]
  %s6 = inlined_call_operand.vmem [shape: f32[1,128], index: 6, kind: input, shape index: {}]
  %s7 = inlined_call_operand.hbm [shape: f32[8,128], index: 7, kind: output, shape index: {}]
  %s8 = sld [smem:[#allocation0]]
  $region46: #{tpu_custom_call.1} parent=0
    _
  %s10 = ssub.s32 1, %s8
  %s11 = scalar_select 0, %s10, %s8
  $region1: #{tpu_custom_call.1} parent=0
    #allocation2 [shape = 'u8[65536]{0}', space=vmem, size = 0x10000, scoped, tag = 'input window, operand 3, single buffered']
    #allocation3 [shape = 's32[1]{0}', space=sflag, size = 0x4, scoped, tag = 'scoped memory for tpu_custom_call.1']
    #allocation4 [shape = 's32[1]{0}', space=sflag, size = 0x4, scoped, tag = 'scoped memory for tpu_custom_call.1']
    #allocation5 [shape = 'u8[65536]{0}', space=vmem, size = 0x10000, scoped, tag = 'input window, operand 5, single buffered']
    #allocation6 [shape = 's32[1]{0}', space=sflag, size = 0x4, scoped, tag = 'scoped memory for tpu_custom_call.1']
    #allocation7 [shape = 'u8[4096]{0}', space=vmem, size = 0x1000, scoped, tag = 'output window, operand 0, single buffered']
    %12 = vsyncpa [#allocation3], 0
    %13 = vsyncpa [#allocation6], 0
    %14 = vsyncpa [#allocation4], 0
    // Predicated region
    $region2: #{tpu_custom_call.1} parent=1 // pred_check
      _
    $region3: #{tpu_custom_call.1} parent=1 // pred_check_branch
      %16 = sbr.rel (0) target = $region5
    $region4: #{tpu_custom_call.1} parent=1 // pred_region
      _
    $region5: #{tpu_custom_call.1} parent=1 // pred_fallthru
      _
    // Predicated region
    $region6: #{tpu_custom_call.1} parent=1 // pred_check
      _
    $region7: #{tpu_custom_call.1} parent=1 // pred_check_branch
      %18 = sbr.rel (0) target = $region9
    $region8: #{tpu_custom_call.1} parent=1 // pred_region
      _
    $region9: #{tpu_custom_call.1} parent=1 // pred_fallthru
      _
    // Predicated region
    $region10: #{tpu_custom_call.1} parent=1 // pred_check
      _
    $region11: #{tpu_custom_call.1} parent=1 // pred_check_branch
      %20 = sbr.rel (0) target = $region13
    $region12: #{tpu_custom_call.1} parent=1 // pred_region
      _
    $region13: #{tpu_custom_call.1} parent=1 // pred_fallthru
      _
    // Predicated region
    $region14: #{tpu_custom_call.1} parent=1 // pred_check
      _
    $region15: #{tpu_custom_call.1} parent=1 // pred_check_branch
      %22 = sbr.rel (0) target = $region17
    $region16: #{tpu_custom_call.1} parent=1 // pred_region
      %s24 = ssub.s32 2048, 2048
      %25 = vsyncadd [#allocation3], %s24
      %s26 = sshll.u32 [#allocation2], 4
      %s27 = int_to_ptr.vmem [resolvable:$true] %s26
      %32 = dma.hbm_to_vmem [thread:$0]  %s3, 2048, %s27, [#allocation3], 128, 128, 8
    $region17: #{tpu_custom_call.1} parent=1 // pred_fallthru
      _
    // Predicated region
    $region18: #{tpu_custom_call.1} parent=1 // pred_check
      _
    $region19: #{tpu_custom_call.1} parent=1 // pred_check_branch
      %34 = sbr.rel (0) target = $region21
    $region20: #{tpu_custom_call.1} parent=1 // pred_region
      _
    $region21: #{tpu_custom_call.1} parent=1 // pred_fallthru
      _
    // Predicated region
    $region22: #{tpu_custom_call.1} parent=1 // pred_check
      _
    $region23: #{tpu_custom_call.1} parent=1 // pred_check_branch
      %36 = sbr.rel (0) target = $region25
    $region24: #{tpu_custom_call.1} parent=1 // pred_region
      %s38 = ssub.s32 2048, 2048
      %39 = vsyncadd [#allocation6], %s38
      %s40 = sshll.u32 [#allocation5], 4
      %s41 = int_to_ptr.vmem [resolvable:$true] %s40
      %46 = dma.hbm_to_vmem [thread:$0]  %s5, 2048, %s41, [#allocation6], 128, 128, 8
    $region25: #{tpu_custom_call.1} parent=1 // pred_fallthru
      _
    // Predicated region
    $region26: #{tpu_custom_call.1} parent=1 // pred_check
      _
    $region27: #{tpu_custom_call.1} parent=1 // pred_check_branch
      %48 = sbr.rel (0) target = $region29
    $region28: #{tpu_custom_call.1} parent=1 // pred_region
      _
    $region29: #{tpu_custom_call.1} parent=1 // pred_fallthru
      _
    // Predicated region
    $region30: #{tpu_custom_call.1} parent=1 // pred_check
      _
    $region31: #{tpu_custom_call.1} parent=1 // pred_check_branch
      %50 = sbr.rel (0) target = $region33
    $region32: #{tpu_custom_call.1} parent=1 // pred_region
      %51 = dma.done [#allocation3], 2048
    $region33: #{tpu_custom_call.1} parent=1 // pred_fallthru
      _
    // Predicated region
    $region34: #{tpu_custom_call.1} parent=1 // pred_check
      _
    $region35: #{tpu_custom_call.1} parent=1 // pred_check_branch
      %53 = sbr.rel (0) target = $region37
    $region36: #{tpu_custom_call.1} parent=1 // pred_region
      %54 = dma.done [#allocation6], 2048
    $region37: #{tpu_custom_call.1} parent=1 // pred_fallthru
      _
    %v55 = vld [vmem:[%s1] sm:$0xf]
    %v56 = vld [vmem:[%s0] sm:$0xff]
    %v57 = vld [vmem:[%s2] sm:$0x1]
    %v59 = vlaneseq
    %v60 = vshrl.u32 %v59, 7
    %v61 = vsub.s32 0, %v60
    %v62 = vrot.slane %v57, %v61
    %vm64 = vcmask 31744
    %v66 = vsel %vm64, %v56, 0
    %vm68 = vcmask 1043456
    %v70 = vsel %vm68, %v55, 0
    %72 = vmatprep.subr.mxu0 0.0
    %73 = vmatpush1.msra.mxu0 0.0
    %74 = vmatprep.subr.mxu0 0.0
    %75 = vmatpush1.msra.mxu0 0.0
    %76 = vmatprep.subr.mxu0 0.0
    %77 = vmatpush1.msra.mxu0 0.0
    %78 = vmatprep.subr.mxu0 0.0
    %79 = vmatpush1.msra.mxu0 0.0
    %80 = vmatprep.subr.mxu0 0.0
    %81 = vmatpush1.msra.mxu0 0.0
    %82 = vmatprep.subr.mxu0 0.0
    %83 = vmatpush1.msra.mxu0 0.0
    %84 = vmatprep.subr.mxu0 0.0
    %85 = vmatpush1.msra.mxu0 0.0
    %86 = vmatprep.subr.mxu0 0.0
    %87 = vmatpush1.msra.mxu0 0.0
    %88 = vmatprep.subr.mxu0 0.0
    %89 = vmatpush1.msra.mxu0 0.0
    %90 = vmatprep.subr.mxu0 0.0
    %91 = vmatpush1.msra.mxu0 0.0
    %92 = vmatprep.subr.mxu0 0.0
    %93 = vmatpush1.msra.mxu0 0.0
    %94 = vmatprep.subr.mxu0 0.0
    %95 = vmatpush1.msra.mxu0 0.0
    %96 = vmatprep.subr.mxu0 0.0
    %97 = vmatpush1.msra.mxu0 0.0
    %98 = vmatprep.subr.mxu0 0.0
    %99 = vmatpush1.msra.mxu0 0.0
    %100 = vmatprep.subr.mxu0 0.0
    %101 = vmatpush1.msra.mxu0 0.0
    %102 = vmatprep.subr.mxu0 0.0
    %103 = vmatpush1.msra.mxu0 %v70
    %104 = vmatprep.subr.mxu0 0.0
    %105 = vmatpush2.msra.mxu0 0.0
    %106 = vmatprep.subr.mxu0 0.0
    %107 = vmatpush2.msra.mxu0 0.0
    %108 = vmatprep.subr.mxu0 0.0
    %109 = vmatpush2.msra.mxu0 0.0
    %110 = vmatprep.subr.mxu0 0.0
    %111 = vmatpush2.msra.mxu0 0.0
    %112 = vmatprep.subr.mxu0 0.0
    %113 = vmatpush2.msra.mxu0 0.0
    %114 = vmatprep.subr.mxu0 0.0
    %115 = vmatpush2.msra.mxu0 0.0
    %116 = vmatprep.subr.mxu0 0.0
    %117 = vmatpush2.msra.mxu0 0.0
    %118 = vmatprep.subr.mxu0 0.0
    %119 = vmatpush2.msra.mxu0 0.0
    %120 = vmatprep.subr.mxu0 0.0
    %121 = vmatpush2.msra.mxu0 0.0
    %122 = vmatprep.subr.mxu0 0.0
    %123 = vmatpush2.msra.mxu0 0.0
    %124 = vmatprep.subr.mxu0 0.0
    %125 = vmatpush2.msra.mxu0 0.0
    %126 = vmatprep.subr.mxu0 0.0
    %127 = vmatpush2.msra.mxu0 0.0
    %128 = vmatprep.subr.mxu0 0.0
    %129 = vmatpush2.msra.mxu0 0.0
    %130 = vmatprep.subr.mxu0 0.0
    %131 = vmatpush2.msra.mxu0 0.0
    %132 = vmatprep.subr.mxu0 0.0
    %133 = vmatpush2.msra.mxu0 0.0
    %134 = vmatprep.subr.mxu0 0.0
    %135 = vmatpush2.msra.mxu0 0.0
    %136 = vmatprep.mubr.f32.mxu0 0.0
    %137 = vmatmul.mubr.f32.gmra.mxu0 %v66
    %v138 = vpop.f32.mrf.mxu0
    %v139 = vadd.f32 %v62, %v138
    %v140 = vpop.f32.mrf.mxu0
    %141 = vdwg.mxu0
    %v142 = vmul.f32 %v139, 0.01
    %v143 = vmax.f32 %v139, %v142
    %v144 = vld [vmem:[#allocation2] sm:$0xff]
    %v145 = vld [vmem:[#allocation2 + $0x8] sm:$0xff]
    %v146 = vld [vmem:[#allocation2 + $0x10] sm:$0xff]
    %v147 = vld [vmem:[#allocation2 + $0x18] sm:$0xff]
    %v148 = vld [vmem:[#allocation2 + $0x20] sm:$0xff]
    %v149 = vld [vmem:[#allocation2 + $0x28] sm:$0xff]
    %v150 = vld [vmem:[#allocation2 + $0x30] sm:$0xff]
    %v151 = vld [vmem:[#allocation2 + $0x38] sm:$0xff]
    %v152 = vld [vmem:[#allocation2 + $0x40] sm:$0xff]
    %v153 = vld [vmem:[#allocation2 + $0x48] sm:$0xff]
    %v154 = vld [vmem:[#allocation2 + $0x50] sm:$0xff]
    %v155 = vld [vmem:[#allocation2 + $0x58] sm:$0xff]
    %v156 = vld [vmem:[#allocation2 + $0x60] sm:$0xff]
    %v157 = vld [vmem:[#allocation2 + $0x68] sm:$0xff]
    %v158 = vld [vmem:[#allocation2 + $0x70] sm:$0xff]
    %v159 = vld [vmem:[#allocation2 + $0x78] sm:$0xff]
    %v160 = vld [vmem:[%s4] sm:$0x1]
    %v162 = vlaneseq
    %v163 = vshrl.u32 %v162, 7
    %v164 = vsub.s32 0, %v163
    %v165 = vrot.slane %v160, %v164
    %167 = vmatprep.subr.mxu0 0.0
    %168 = vmatpush1.msra.mxu0 %v159
    %169 = vmatprep.subr.mxu0 0.0
    %170 = vmatpush1.msra.mxu0 %v158
    %171 = vmatprep.subr.mxu0 0.0
    %172 = vmatpush1.msra.mxu0 %v157
    %173 = vmatprep.subr.mxu0 0.0
    %174 = vmatpush1.msra.mxu0 %v156
    %175 = vmatprep.subr.mxu0 0.0
    %176 = vmatpush1.msra.mxu0 %v155
    %177 = vmatprep.subr.mxu0 0.0
    %178 = vmatpush1.msra.mxu0 %v154
    %179 = vmatprep.subr.mxu0 0.0
    %180 = vmatpush1.msra.mxu0 %v153
    %181 = vmatprep.subr.mxu0 0.0
    %182 = vmatpush1.msra.mxu0 %v152
    %183 = vmatprep.subr.mxu0 0.0
    %184 = vmatpush1.msra.mxu0 %v151
    %185 = vmatprep.subr.mxu0 0.0
    %186 = vmatpush1.msra.mxu0 %v150
    %187 = vmatprep.subr.mxu0 0.0
    %188 = vmatpush1.msra.mxu0 %v149
    %189 = vmatprep.subr.mxu0 0.0
    %190 = vmatpush1.msra.mxu0 %v148
    %191 = vmatprep.subr.mxu0 0.0
    %192 = vmatpush1.msra.mxu0 %v147
    %193 = vmatprep.subr.mxu0 0.0
    %194 = vmatpush1.msra.mxu0 %v146
    %195 = vmatprep.subr.mxu0 0.0
    %196 = vmatpush1.msra.mxu0 %v145
    %197 = vmatprep.subr.mxu0 0.0
    %198 = vmatpush1.msra.mxu0 %v144
    %199 = vmatprep.subr.mxu0 0.0
    %200 = vmatpush2.msra.mxu0 0.0
    %201 = vmatprep.subr.mxu0 0.0
    %202 = vmatpush2.msra.mxu0 0.0
    %203 = vmatprep.subr.mxu0 0.0
    %204 = vmatpush2.msra.mxu0 0.0
    %205 = vmatprep.subr.mxu0 0.0
    %206 = vmatpush2.msra.mxu0 0.0
    %207 = vmatprep.subr.mxu0 0.0
    %208 = vmatpush2.msra.mxu0 0.0
    %209 = vmatprep.subr.mxu0 0.0
    %210 = vmatpush2.msra.mxu0 0.0
    %211 = vmatprep.subr.mxu0 0.0
    %212 = vmatpush2.msra.mxu0 0.0
    %213 = vmatprep.subr.mxu0 0.0
    %214 = vmatpush2.msra.mxu0 0.0
    %215 = vmatprep.subr.mxu0 0.0
    %216 = vmatpush2.msra.mxu0 0.0
    %217 = vmatprep.subr.mxu0 0.0
    %218 = vmatpush2.msra.mxu0 0.0
    %219 = vmatprep.subr.mxu0 0.0
    %220 = vmatpush2.msra.mxu0 0.0
    %221 = vmatprep.subr.mxu0 0.0
    %222 = vmatpush2.msra.mxu0 0.0
    %223 = vmatprep.subr.mxu0 0.0
    %224 = vmatpush2.msra.mxu0 0.0
    %225 = vmatprep.subr.mxu0 0.0
    %226 = vmatpush2.msra.mxu0 0.0
    %227 = vmatprep.subr.mxu0 0.0
    %228 = vmatpush2.msra.mxu0 0.0
    %229 = vmatprep.subr.mxu0 0.0
    %230 = vmatpush2.msra.mxu0 0.0
    %231 = vmatprep.mubr.f32.mxu0 0.0
    %232 = vmatmul.mubr.f32.gmra.mxu0 %v143
    %v233 = vpop.f32.mrf.mxu0
    %v234 = vadd.f32 %v165, %v233
    %v235 = vpop.f32.mrf.mxu0
    %236 = vdwg.mxu0
    %v237 = vmul.f32 %v234, 0.01
    %v238 = vmax.f32 %v234, %v237
    %239 = vmatprep.subr.mxu0 0.0
    %240 = vmatpush1.msra.mxu0 %v159
    %241 = vmatprep.subr.mxu0 0.0
    %242 = vmatpush1.msra.mxu0 %v158
    %243 = vmatprep.subr.mxu0 0.0
    %244 = vmatpush1.msra.mxu0 %v157
    %245 = vmatprep.subr.mxu0 0.0
    %246 = vmatpush1.msra.mxu0 %v156
    %247 = vmatprep.subr.mxu0 0.0
    %248 = vmatpush1.msra.mxu0 %v155
    %249 = vmatprep.subr.mxu0 0.0
    %250 = vmatpush1.msra.mxu0 %v154
    %251 = vmatprep.subr.mxu0 0.0
    %252 = vmatpush1.msra.mxu0 %v153
    %253 = vmatprep.subr.mxu0 0.0
    %254 = vmatpush1.msra.mxu0 %v152
    %255 = vmatprep.subr.mxu0 0.0
    %256 = vmatpush1.msra.mxu0 %v151
    %257 = vmatprep.subr.mxu0 0.0
    %258 = vmatpush1.msra.mxu0 %v150
    %259 = vmatprep.subr.mxu0 0.0
    %260 = vmatpush1.msra.mxu0 %v149
    %261 = vmatprep.subr.mxu0 0.0
    %262 = vmatpush1.msra.mxu0 %v148
    %263 = vmatprep.subr.mxu0 0.0
    %264 = vmatpush1.msra.mxu0 %v147
    %265 = vmatprep.subr.mxu0 0.0
    %266 = vmatpush1.msra.mxu0 %v146
    %267 = vmatprep.subr.mxu0 0.0
    %268 = vmatpush1.msra.mxu0 %v145
    %269 = vmatprep.subr.mxu0 0.0
    %270 = vmatpush1.msra.mxu0 %v144
    %271 = vmatprep.subr.mxu0 0.0
    %272 = vmatpush2.msra.mxu0 0.0
    %273 = vmatprep.subr.mxu0 0.0
    %274 = vmatpush2.msra.mxu0 0.0
    %275 = vmatprep.subr.mxu0 0.0
    %276 = vmatpush2.msra.mxu0 0.0
    %277 = vmatprep.subr.mxu0 0.0
    %278 = vmatpush2.msra.mxu0 0.0
    %279 = vmatprep.subr.mxu0 0.0
    %280 = vmatpush2.msra.mxu0 0.0
    %281 = vmatprep.subr.mxu0 0.0
    %282 = vmatpush2.msra.mxu0 0.0
    %283 = vmatprep.subr.mxu0 0.0
    %284 = vmatpush2.msra.mxu0 0.0
    %285 = vmatprep.subr.mxu0 0.0
    %286 = vmatpush2.msra.mxu0 0.0
    %287 = vmatprep.subr.mxu0 0.0
    %288 = vmatpush2.msra.mxu0 0.0
    %289 = vmatprep.subr.mxu0 0.0
    %290 = vmatpush2.msra.mxu0 0.0
    %291 = vmatprep.subr.mxu0 0.0
    %292 = vmatpush2.msra.mxu0 0.0
    %293 = vmatprep.subr.mxu0 0.0
    %294 = vmatpush2.msra.mxu0 0.0
    %295 = vmatprep.subr.mxu0 0.0
    %296 = vmatpush2.msra.mxu0 0.0
    %297 = vmatprep.subr.mxu0 0.0
    %298 = vmatpush2.msra.mxu0 0.0
    %299 = vmatprep.subr.mxu0 0.0
    %300 = vmatpush2.msra.mxu0 0.0
    %301 = vmatprep.subr.mxu0 0.0
    %302 = vmatpush2.msra.mxu0 0.0
    %303 = vmatprep.mubr.f32.mxu0 0.0
    %304 = vmatmul.mubr.f32.gmra.mxu0 %v238
    %v305 = vpop.f32.mrf.mxu0
    %v306 = vadd.f32 %v165, %v305
    %v307 = vpop.f32.mrf.mxu0
    %308 = vdwg.mxu0
    %v309 = vmul.f32 %v306, 0.01
    %v310 = vmax.f32 %v306, %v309
    %311 = vmatprep.subr.mxu0 0.0
    %312 = vmatpush1.msra.mxu0 %v159
    %313 = vmatprep.subr.mxu0 0.0
    %314 = vmatpush1.msra.mxu0 %v158
    %315 = vmatprep.subr.mxu0 0.0
    %316 = vmatpush1.msra.mxu0 %v157
    %317 = vmatprep.subr.mxu0 0.0
    %318 = vmatpush1.msra.mxu0 %v156
    %319 = vmatprep.subr.mxu0 0.0
    %320 = vmatpush1.msra.mxu0 %v155
    %321 = vmatprep.subr.mxu0 0.0
    %322 = vmatpush1.msra.mxu0 %v154
    %323 = vmatprep.subr.mxu0 0.0
    %324 = vmatpush1.msra.mxu0 %v153
    %325 = vmatprep.subr.mxu0 0.0
    %326 = vmatpush1.msra.mxu0 %v152
    %327 = vmatprep.subr.mxu0 0.0
    %328 = vmatpush1.msra.mxu0 %v151
    %329 = vmatprep.subr.mxu0 0.0
    %330 = vmatpush1.msra.mxu0 %v150
    %331 = vmatprep.subr.mxu0 0.0
    %332 = vmatpush1.msra.mxu0 %v149
    %333 = vmatprep.subr.mxu0 0.0
    %334 = vmatpush1.msra.mxu0 %v148
    %335 = vmatprep.subr.mxu0 0.0
    %336 = vmatpush1.msra.mxu0 %v147
    %337 = vmatprep.subr.mxu0 0.0
    %338 = vmatpush1.msra.mxu0 %v146
    %339 = vmatprep.subr.mxu0 0.0
    %340 = vmatpush1.msra.mxu0 %v145
    %341 = vmatprep.subr.mxu0 0.0
    %342 = vmatpush1.msra.mxu0 %v144
    %343 = vmatprep.subr.mxu0 0.0
    %344 = vmatpush2.msra.mxu0 0.0
    %345 = vmatprep.subr.mxu0 0.0
    %346 = vmatpush2.msra.mxu0 0.0
    %347 = vmatprep.subr.mxu0 0.0
    %348 = vmatpush2.msra.mxu0 0.0
    %349 = vmatprep.subr.mxu0 0.0
    %350 = vmatpush2.msra.mxu0 0.0
    %351 = vmatprep.subr.mxu0 0.0
    %352 = vmatpush2.msra.mxu0 0.0
    %353 = vmatprep.subr.mxu0 0.0
    %354 = vmatpush2.msra.mxu0 0.0
    %355 = vmatprep.subr.mxu0 0.0
    %356 = vmatpush2.msra.mxu0 0.0
    %357 = vmatprep.subr.mxu0 0.0
    %358 = vmatpush2.msra.mxu0 0.0
    %359 = vmatprep.subr.mxu0 0.0
    %360 = vmatpush2.msra.mxu0 0.0
    %361 = vmatprep.subr.mxu0 0.0
    %362 = vmatpush2.msra.mxu0 0.0
    %363 = vmatprep.subr.mxu0 0.0
    %364 = vmatpush2.msra.mxu0 0.0
    %365 = vmatprep.subr.mxu0 0.0
    %366 = vmatpush2.msra.mxu0 0.0
    %367 = vmatprep.subr.mxu0 0.0
    %368 = vmatpush2.msra.mxu0 0.0
    %369 = vmatprep.subr.mxu0 0.0
    %370 = vmatpush2.msra.mxu0 0.0
    %371 = vmatprep.subr.mxu0 0.0
    %372 = vmatpush2.msra.mxu0 0.0
    %373 = vmatprep.subr.mxu0 0.0
    %374 = vmatpush2.msra.mxu0 0.0
    %375 = vmatprep.mubr.f32.mxu0 0.0
    %376 = vmatmul.mubr.f32.gmra.mxu0 %v310
    %v377 = vpop.f32.mrf.mxu0
    %v378 = vadd.f32 %v165, %v377
    %v379 = vpop.f32.mrf.mxu0
    %380 = vdwg.mxu0
    %v381 = vmul.f32 %v378, 0.01
    %v382 = vmax.f32 %v378, %v381
    %v383 = vld [vmem:[#allocation5] sm:$0xff]
    %v384 = vld [vmem:[#allocation5 + $0x8] sm:$0xff]
    %v385 = vld [vmem:[#allocation5 + $0x10] sm:$0xff]
    %v386 = vld [vmem:[#allocation5 + $0x18] sm:$0xff]
    %v387 = vld [vmem:[#allocation5 + $0x20] sm:$0xff]
    %v388 = vld [vmem:[#allocation5 + $0x28] sm:$0xff]
    %v389 = vld [vmem:[#allocation5 + $0x30] sm:$0xff]
    %v390 = vld [vmem:[#allocation5 + $0x38] sm:$0xff]
    %v391 = vld [vmem:[#allocation5 + $0x40] sm:$0xff]
    %v392 = vld [vmem:[#allocation5 + $0x48] sm:$0xff]
    %v393 = vld [vmem:[#allocation5 + $0x50] sm:$0xff]
    %v394 = vld [vmem:[#allocation5 + $0x58] sm:$0xff]
    %v395 = vld [vmem:[#allocation5 + $0x60] sm:$0xff]
    %v396 = vld [vmem:[#allocation5 + $0x68] sm:$0xff]
    %v397 = vld [vmem:[#allocation5 + $0x70] sm:$0xff]
    %v398 = vld [vmem:[#allocation5 + $0x78] sm:$0xff]
    %v399 = vld [vmem:[%s6] sm:$0x1]
    %v401 = vlaneseq
    %v402 = vshrl.u32 %v401, 7
    %v403 = vsub.s32 0, %v402
    %v404 = vrot.slane %v399, %v403
    %406 = vmatprep.subr.mxu0 0.0
    %407 = vmatpush1.msra.mxu0 %v398
    %408 = vmatprep.subr.mxu0 0.0
    %409 = vmatpush1.msra.mxu0 %v397
    %410 = vmatprep.subr.mxu0 0.0
    %411 = vmatpush1.msra.mxu0 %v396
    %412 = vmatprep.subr.mxu0 0.0
    %413 = vmatpush1.msra.mxu0 %v395
    %414 = vmatprep.subr.mxu0 0.0
    %415 = vmatpush1.msra.mxu0 %v394
    %416 = vmatprep.subr.mxu0 0.0
    %417 = vmatpush1.msra.mxu0 %v393
    %418 = vmatprep.subr.mxu0 0.0
    %419 = vmatpush1.msra.mxu0 %v392
    %420 = vmatprep.subr.mxu0 0.0
    %421 = vmatpush1.msra.mxu0 %v391
    %422 = vmatprep.subr.mxu0 0.0
    %423 = vmatpush1.msra.mxu0 %v390
    %424 = vmatprep.subr.mxu0 0.0
    %425 = vmatpush1.msra.mxu0 %v389
    %426 = vmatprep.subr.mxu0 0.0
    %427 = vmatpush1.msra.mxu0 %v388
    %428 = vmatprep.subr.mxu0 0.0
    %429 = vmatpush1.msra.mxu0 %v387
    %430 = vmatprep.subr.mxu0 0.0
    %431 = vmatpush1.msra.mxu0 %v386
    %432 = vmatprep.subr.mxu0 0.0
    %433 = vmatpush1.msra.mxu0 %v385
    %434 = vmatprep.subr.mxu0 0.0
    %435 = vmatpush1.msra.mxu0 %v384
    %436 = vmatprep.subr.mxu0 0.0
    %437 = vmatpush1.msra.mxu0 %v383
    %438 = vmatprep.subr.mxu0 0.0
    %439 = vmatpush2.msra.mxu0 0.0
    %440 = vmatprep.subr.mxu0 0.0
    %441 = vmatpush2.msra.mxu0 0.0
    %442 = vmatprep.subr.mxu0 0.0
    %443 = vmatpush2.msra.mxu0 0.0
    %444 = vmatprep.subr.mxu0 0.0
    %445 = vmatpush2.msra.mxu0 0.0
    %446 = vmatprep.subr.mxu0 0.0
    %447 = vmatpush2.msra.mxu0 0.0
    %448 = vmatprep.subr.mxu0 0.0
    %449 = vmatpush2.msra.mxu0 0.0
    %450 = vmatprep.subr.mxu0 0.0
    %451 = vmatpush2.msra.mxu0 0.0
    %452 = vmatprep.subr.mxu0 0.0
    %453 = vmatpush2.msra.mxu0 0.0
    %454 = vmatprep.subr.mxu0 0.0
    %455 = vmatpush2.msra.mxu0 0.0
    %456 = vmatprep.subr.mxu0 0.0
    %457 = vmatpush2.msra.mxu0 0.0
    %458 = vmatprep.subr.mxu0 0.0
    %459 = vmatpush2.msra.mxu0 0.0
    %460 = vmatprep.subr.mxu0 0.0
    %461 = vmatpush2.msra.mxu0 0.0
    %462 = vmatprep.subr.mxu0 0.0
    %463 = vmatpush2.msra.mxu0 0.0
    %464 = vmatprep.subr.mxu0 0.0
    %465 = vmatpush2.msra.mxu0 0.0
    %466 = vmatprep.subr.mxu0 0.0
    %467 = vmatpush2.msra.mxu0 0.0
    %468 = vmatprep.subr.mxu0 0.0
    %469 = vmatpush2.msra.mxu0 0.0
    %470 = vmatprep.mubr.f32.mxu0 0.0
    %471 = vmatmul.mubr.f32.gmra.mxu0 %v382
    %v472 = vpop.f32.mrf.mxu0
    %v473 = vadd.f32 %v404, %v472
    %v474 = vpop.f32.mrf.mxu0
    %475 = vdwg.mxu0
    %476 = vst [vmem:[#allocation7] sm:$0xff] %v473
    // Predicated region
    $region38: #{tpu_custom_call.1} parent=1 // pred_check
      _
    $region39: #{tpu_custom_call.1} parent=1 // pred_check_branch
      %478 = sbr.rel (0) target = $region41
    $region40: #{tpu_custom_call.1} parent=1 // pred_region
      %s480 = ssub.s32 128, 128
      %481 = vsyncadd [#allocation4], %s480
      %s483 = sshll.u32 [#allocation7], 4
      %s484 = int_to_ptr.vmem [resolvable:$true] %s483
      %486 = dma.vmem_to_hbm [thread:$0]  %s484, 128, %s7, [#allocation4]
    $region41: #{tpu_custom_call.1} parent=1 // pred_fallthru
      _
    // Predicated region
    $region42: #{tpu_custom_call.1} parent=1 // pred_check
      _
    $region43: #{tpu_custom_call.1} parent=1 // pred_check_branch
      %488 = sbr.rel (0) target = $region45
    $region44: #{tpu_custom_call.1} parent=1 // pred_region
      %489 = dma.done [#allocation4], 128
    $region45: #{tpu_custom_call.1} parent=1 // pred_fallthru
      _
    %490 = vsyncpa [#allocation3], 1
    %491 = vsyncpa [#allocation6], 1
    %492 = vsyncpa [#allocation4], 1

// kernel: tpu_custom_call.1
$region0: #{tpu_custom_call.1}
  #allocation0 [shape = 'u32[]', space=smem, size = 0x4, offset = 0x4, fixed_abs, tag = 'smem constant byte address 0x4 - core index']
  #allocation1 [shape = 'u32[144,128]{1,0:T(1,128)}', space=vmem, size = 0x12000, scoped, tag = 'internal scratch']
  %s0 = inlined_call_operand.vmem [shape: f32[8,4], index: 0, kind: input, shape index: {}]
  %s1 = inlined_call_operand.vmem [shape: f32[4,128], index: 1, kind: input, shape index: {}]
  %s2 = inlined_call_operand.vmem [shape: f32[1,128], index: 2, kind: input, shape index: {}]
  %s3 = inlined_call_operand.hbm [shape: f32[128,128], index: 3, kind: input, shape index: {}]
  %s4 = inlined_call_operand.vmem [shape: f32[1,128], index: 4, kind: input, shape index: {}]
  %s5 = inlined_call_operand.hbm [shape: f32[128,128], index: 5, kind: input, shape index: {}]
  %s6 = inlined_call_operand.vmem [shape: f32[1,128], index: 6, kind: input, shape index: {}]
  %s7 = inlined_call_operand.hbm [shape: f32[8,128], index: 7, kind: output, shape index: {}]
  %s8 = sld [smem:[#allocation0]]
  $region46: #{tpu_custom_call.1} parent=0
    _
  %s10 = ssub.s32 1, %s8
  %s11 = scalar_select 0, %s10, %s8
  $region1: #{tpu_custom_call.1} parent=0
    #allocation2 [shape = 'u8[65536]{0}', space=vmem, size = 0x10000, scoped, tag = 'input window, operand 3, single buffered']
    #allocation3 [shape = 's32[1]{0}', space=sflag, size = 0x4, scoped, tag = 'scoped memory for tpu_custom_call.1']
    #allocation4 [shape = 's32[1]{0}', space=sflag, size = 0x4, scoped, tag = 'scoped memory for tpu_custom_call.1']
    #allocation5 [shape = 'u8[65536]{0}', space=vmem, size = 0x10000, scoped, tag = 'input window, operand 5, single buffered']
    #allocation6 [shape = 's32[1]{0}', space=sflag, size = 0x4, scoped, tag = 'scoped memory for tpu_custom_call.1']
    #allocation7 [shape = 'u8[4096]{0}', space=vmem, size = 0x1000, scoped, tag = 'output window, operand 0, single buffered']
    %12 = vsyncpa [#allocation3], 0
    %13 = vsyncpa [#allocation6], 0
    %14 = vsyncpa [#allocation4], 0
    // Predicated region
    $region2: #{tpu_custom_call.1} parent=1 // pred_check
      _
    $region3: #{tpu_custom_call.1} parent=1 // pred_check_branch
      %16 = sbr.rel (0) target = $region5
    $region4: #{tpu_custom_call.1} parent=1 // pred_region
      _
    $region5: #{tpu_custom_call.1} parent=1 // pred_fallthru
      _
    // Predicated region
    $region6: #{tpu_custom_call.1} parent=1 // pred_check
      _
    $region7: #{tpu_custom_call.1} parent=1 // pred_check_branch
      %18 = sbr.rel (0) target = $region9
    $region8: #{tpu_custom_call.1} parent=1 // pred_region
      _
    $region9: #{tpu_custom_call.1} parent=1 // pred_fallthru
      _
    // Predicated region
    $region10: #{tpu_custom_call.1} parent=1 // pred_check
      _
    $region11: #{tpu_custom_call.1} parent=1 // pred_check_branch
      %20 = sbr.rel (0) target = $region13
    $region12: #{tpu_custom_call.1} parent=1 // pred_region
      _
    $region13: #{tpu_custom_call.1} parent=1 // pred_fallthru
      _
    // Predicated region
    $region14: #{tpu_custom_call.1} parent=1 // pred_check
      _
    $region15: #{tpu_custom_call.1} parent=1 // pred_check_branch
      %22 = sbr.rel (0) target = $region17
    $region16: #{tpu_custom_call.1} parent=1 // pred_region
      %s24 = ssub.s32 2048, 2048
      %25 = vsyncadd [#allocation3], %s24
      %s26 = sshll.u32 [#allocation2], 4
      %s27 = int_to_ptr.vmem [resolvable:$true] %s26
      %32 = dma.hbm_to_vmem [thread:$0]  %s3, 2048, %s27, [#allocation3], 128, 128, 8
    $region17: #{tpu_custom_call.1} parent=1 // pred_fallthru
      _
    // Predicated region
    $region18: #{tpu_custom_call.1} parent=1 // pred_check
      _
    $region19: #{tpu_custom_call.1} parent=1 // pred_check_branch
      %34 = sbr.rel (0) target = $region21
    $region20: #{tpu_custom_call.1} parent=1 // pred_region
      _
    $region21: #{tpu_custom_call.1} parent=1 // pred_fallthru
      _
    // Predicated region
    $region22: #{tpu_custom_call.1} parent=1 // pred_check
      _
    $region23: #{tpu_custom_call.1} parent=1 // pred_check_branch
      %36 = sbr.rel (0) target = $region25
    $region24: #{tpu_custom_call.1} parent=1 // pred_region
      %s38 = ssub.s32 2048, 2048
      %39 = vsyncadd [#allocation6], %s38
      %s40 = sshll.u32 [#allocation5], 4
      %s41 = int_to_ptr.vmem [resolvable:$true] %s40
      %46 = dma.hbm_to_vmem [thread:$0]  %s5, 2048, %s41, [#allocation6], 128, 128, 8
    $region25: #{tpu_custom_call.1} parent=1 // pred_fallthru
      _
    // Predicated region
    $region26: #{tpu_custom_call.1} parent=1 // pred_check
      _
    $region27: #{tpu_custom_call.1} parent=1 // pred_check_branch
      %48 = sbr.rel (0) target = $region29
    $region28: #{tpu_custom_call.1} parent=1 // pred_region
      _
    $region29: #{tpu_custom_call.1} parent=1 // pred_fallthru
      _
    // Predicated region
    $region30: #{tpu_custom_call.1} parent=1 // pred_check
      _
    $region31: #{tpu_custom_call.1} parent=1 // pred_check_branch
      %50 = sbr.rel (0) target = $region33
    $region32: #{tpu_custom_call.1} parent=1 // pred_region
      %51 = dma.done [#allocation3], 2048
    $region33: #{tpu_custom_call.1} parent=1 // pred_fallthru
      _
    // Predicated region
    $region34: #{tpu_custom_call.1} parent=1 // pred_check
      _
    $region35: #{tpu_custom_call.1} parent=1 // pred_check_branch
      %53 = sbr.rel (0) target = $region37
    $region36: #{tpu_custom_call.1} parent=1 // pred_region
      %54 = dma.done [#allocation6], 2048
    $region37: #{tpu_custom_call.1} parent=1 // pred_fallthru
      _
    %v55 = vld [vmem:[%s1] sm:$0xf]
    %v56 = vld [vmem:[%s0] sm:$0xff]
    %v57 = vld [vmem:[%s2] sm:$0x1]
    %v59 = vlaneseq
    %v60 = vshrl.u32 %v59, 7
    %v61 = vsub.s32 0, %v60
    %v62 = vrot.slane %v57, %v61
    %vm64 = vcmask 31744
    %v66 = vsel %vm64, %v56, 0
    %vm68 = vcmask 1043456
    %v70 = vsel %vm68, %v55, 0
    %72 = vmatprep.subr.mxu0 0.0
    %73 = vmatpush1.msra.mxu0 0.0
    %74 = vmatprep.subr.mxu0 0.0
    %75 = vmatpush1.msra.mxu0 0.0
    %76 = vmatprep.subr.mxu0 0.0
    %77 = vmatpush1.msra.mxu0 0.0
    %78 = vmatprep.subr.mxu0 0.0
    %79 = vmatpush1.msra.mxu0 0.0
    %80 = vmatprep.subr.mxu0 0.0
    %81 = vmatpush1.msra.mxu0 0.0
    %82 = vmatprep.subr.mxu0 0.0
    %83 = vmatpush1.msra.mxu0 0.0
    %84 = vmatprep.subr.mxu0 0.0
    %85 = vmatpush1.msra.mxu0 0.0
    %86 = vmatprep.subr.mxu0 0.0
    %87 = vmatpush1.msra.mxu0 0.0
    %88 = vmatprep.subr.mxu0 0.0
    %89 = vmatpush1.msra.mxu0 0.0
    %90 = vmatprep.subr.mxu0 0.0
    %91 = vmatpush1.msra.mxu0 0.0
    %92 = vmatprep.subr.mxu0 0.0
    %93 = vmatpush1.msra.mxu0 0.0
    %94 = vmatprep.subr.mxu0 0.0
    %95 = vmatpush1.msra.mxu0 0.0
    %96 = vmatprep.subr.mxu0 0.0
    %97 = vmatpush1.msra.mxu0 0.0
    %98 = vmatprep.subr.mxu0 0.0
    %99 = vmatpush1.msra.mxu0 0.0
    %100 = vmatprep.subr.mxu0 0.0
    %101 = vmatpush1.msra.mxu0 0.0
    %102 = vmatprep.subr.mxu0 0.0
    %103 = vmatpush1.msra.mxu0 %v70
    %104 = vmatprep.subr.mxu0 0.0
    %105 = vmatpush2.msra.mxu0 0.0
    %106 = vmatprep.subr.mxu0 0.0
    %107 = vmatpush2.msra.mxu0 0.0
    %108 = vmatprep.subr.mxu0 0.0
    %109 = vmatpush2.msra.mxu0 0.0
    %110 = vmatprep.subr.mxu0 0.0
    %111 = vmatpush2.msra.mxu0 0.0
    %112 = vmatprep.subr.mxu0 0.0
    %113 = vmatpush2.msra.mxu0 0.0
    %114 = vmatprep.subr.mxu0 0.0
    %115 = vmatpush2.msra.mxu0 0.0
    %116 = vmatprep.subr.mxu0 0.0
    %117 = vmatpush2.msra.mxu0 0.0
    %118 = vmatprep.subr.mxu0 0.0
    %119 = vmatpush2.msra.mxu0 0.0
    %120 = vmatprep.subr.mxu0 0.0
    %121 = vmatpush2.msra.mxu0 0.0
    %122 = vmatprep.subr.mxu0 0.0
    %123 = vmatpush2.msra.mxu0 0.0
    %124 = vmatprep.subr.mxu0 0.0
    %125 = vmatpush2.msra.mxu0 0.0
    %126 = vmatprep.subr.mxu0 0.0
    %127 = vmatpush2.msra.mxu0 0.0
    %128 = vmatprep.subr.mxu0 0.0
    %129 = vmatpush2.msra.mxu0 0.0
    %130 = vmatprep.subr.mxu0 0.0
    %131 = vmatpush2.msra.mxu0 0.0
    %132 = vmatprep.subr.mxu0 0.0
    %133 = vmatpush2.msra.mxu0 0.0
    %134 = vmatprep.subr.mxu0 0.0
    %135 = vmatpush2.msra.mxu0 0.0
    %136 = vmatprep.mubr.f32.mxu0 0.0
    %137 = vmatmul.mubr.f32.gmra.mxu0 %v66
    %v138 = vpop.f32.mrf.mxu0
    %v139 = vadd.f32 %v62, %v138
    %v140 = vpop.f32.mrf.mxu0
    %141 = vdwg.mxu0
    %v142 = vmul.f32 %v139, 0.01
    %v143 = vmax.f32 %v139, %v142
    %v144 = vld [vmem:[#allocation2] sm:$0xff]
    %v145 = vld [vmem:[#allocation2 + $0x8] sm:$0xff]
    %v146 = vld [vmem:[#allocation2 + $0x10] sm:$0xff]
    %v147 = vld [vmem:[#allocation2 + $0x18] sm:$0xff]
    %v148 = vld [vmem:[#allocation2 + $0x20] sm:$0xff]
    %v149 = vld [vmem:[#allocation2 + $0x28] sm:$0xff]
    %v150 = vld [vmem:[#allocation2 + $0x30] sm:$0xff]
    %v151 = vld [vmem:[#allocation2 + $0x38] sm:$0xff]
    %v152 = vld [vmem:[#allocation2 + $0x40] sm:$0xff]
    %v153 = vld [vmem:[#allocation2 + $0x48] sm:$0xff]
    %v154 = vld [vmem:[#allocation2 + $0x50] sm:$0xff]
    %v155 = vld [vmem:[#allocation2 + $0x58] sm:$0xff]
    %v156 = vld [vmem:[#allocation2 + $0x60] sm:$0xff]
    %v157 = vld [vmem:[#allocation2 + $0x68] sm:$0xff]
    %v158 = vld [vmem:[#allocation2 + $0x70] sm:$0xff]
    %v159 = vld [vmem:[#allocation2 + $0x78] sm:$0xff]
    %v160 = vld [vmem:[%s4] sm:$0x1]
    %v162 = vlaneseq
    %v163 = vshrl.u32 %v162, 7
    %v164 = vsub.s32 0, %v163
    %v165 = vrot.slane %v160, %v164
    %167 = vmatprep.subr.mxu0 0.0
    %168 = vmatpush1.msra.mxu0 %v159
    %169 = vmatprep.subr.mxu0 0.0
    %170 = vmatpush1.msra.mxu0 %v158
    %171 = vmatprep.subr.mxu0 0.0
    %172 = vmatpush1.msra.mxu0 %v157
    %173 = vmatprep.subr.mxu0 0.0
    %174 = vmatpush1.msra.mxu0 %v156
    %175 = vmatprep.subr.mxu0 0.0
    %176 = vmatpush1.msra.mxu0 %v155
    %177 = vmatprep.subr.mxu0 0.0
    %178 = vmatpush1.msra.mxu0 %v154
    %179 = vmatprep.subr.mxu0 0.0
    %180 = vmatpush1.msra.mxu0 %v153
    %181 = vmatprep.subr.mxu0 0.0
    %182 = vmatpush1.msra.mxu0 %v152
    %183 = vmatprep.subr.mxu0 0.0
    %184 = vmatpush1.msra.mxu0 %v151
    %185 = vmatprep.subr.mxu0 0.0
    %186 = vmatpush1.msra.mxu0 %v150
    %187 = vmatprep.subr.mxu0 0.0
    %188 = vmatpush1.msra.mxu0 %v149
    %189 = vmatprep.subr.mxu0 0.0
    %190 = vmatpush1.msra.mxu0 %v148
    %191 = vmatprep.subr.mxu0 0.0
    %192 = vmatpush1.msra.mxu0 %v147
    %193 = vmatprep.subr.mxu0 0.0
    %194 = vmatpush1.msra.mxu0 %v146
    %195 = vmatprep.subr.mxu0 0.0
    %196 = vmatpush1.msra.mxu0 %v145
    %197 = vmatprep.subr.mxu0 0.0
    %198 = vmatpush1.msra.mxu0 %v144
    %199 = vmatprep.subr.mxu0 0.0
    %200 = vmatpush2.msra.mxu0 0.0
    %201 = vmatprep.subr.mxu0 0.0
    %202 = vmatpush2.msra.mxu0 0.0
    %203 = vmatprep.subr.mxu0 0.0
    %204 = vmatpush2.msra.mxu0 0.0
    %205 = vmatprep.subr.mxu0 0.0
    %206 = vmatpush2.msra.mxu0 0.0
    %207 = vmatprep.subr.mxu0 0.0
    %208 = vmatpush2.msra.mxu0 0.0
    %209 = vmatprep.subr.mxu0 0.0
    %210 = vmatpush2.msra.mxu0 0.0
    %211 = vmatprep.subr.mxu0 0.0
    %212 = vmatpush2.msra.mxu0 0.0
    %213 = vmatprep.subr.mxu0 0.0
    %214 = vmatpush2.msra.mxu0 0.0
    %215 = vmatprep.subr.mxu0 0.0
    %216 = vmatpush2.msra.mxu0 0.0
    %217 = vmatprep.subr.mxu0 0.0
    %218 = vmatpush2.msra.mxu0 0.0
    %219 = vmatprep.subr.mxu0 0.0
    %220 = vmatpush2.msra.mxu0 0.0
    %221 = vmatprep.subr.mxu0 0.0
    %222 = vmatpush2.msra.mxu0 0.0
    %223 = vmatprep.subr.mxu0 0.0
    %224 = vmatpush2.msra.mxu0 0.0
    %225 = vmatprep.subr.mxu0 0.0
    %226 = vmatpush2.msra.mxu0 0.0
    %227 = vmatprep.subr.mxu0 0.0
    %228 = vmatpush2.msra.mxu0 0.0
    %229 = vmatprep.subr.mxu0 0.0
    %230 = vmatpush2.msra.mxu0 0.0
    %231 = vmatprep.mubr.f32.mxu0 0.0
    %232 = vmatmul.mubr.f32.gmra.mxu0 %v143
    %v233 = vpop.f32.mrf.mxu0
    %v234 = vadd.f32 %v165, %v233
    %v235 = vpop.f32.mrf.mxu0
    %236 = vdwg.mxu0
    %v237 = vmul.f32 %v234, 0.01
    %v238 = vmax.f32 %v234, %v237
    %239 = vmatprep.subr.mxu0 0.0
    %240 = vmatpush1.msra.mxu0 %v159
    %241 = vmatprep.subr.mxu0 0.0
    %242 = vmatpush1.msra.mxu0 %v158
    %243 = vmatprep.subr.mxu0 0.0
    %244 = vmatpush1.msra.mxu0 %v157
    %245 = vmatprep.subr.mxu0 0.0
    %246 = vmatpush1.msra.mxu0 %v156
    %247 = vmatprep.subr.mxu0 0.0
    %248 = vmatpush1.msra.mxu0 %v155
    %249 = vmatprep.subr.mxu0 0.0
    %250 = vmatpush1.msra.mxu0 %v154
    %251 = vmatprep.subr.mxu0 0.0
    %252 = vmatpush1.msra.mxu0 %v153
    %253 = vmatprep.subr.mxu0 0.0
    %254 = vmatpush1.msra.mxu0 %v152
    %255 = vmatprep.subr.mxu0 0.0
    %256 = vmatpush1.msra.mxu0 %v151
    %257 = vmatprep.subr.mxu0 0.0
    %258 = vmatpush1.msra.mxu0 %v150
    %259 = vmatprep.subr.mxu0 0.0
    %260 = vmatpush1.msra.mxu0 %v149
    %261 = vmatprep.subr.mxu0 0.0
    %262 = vmatpush1.msra.mxu0 %v148
    %263 = vmatprep.subr.mxu0 0.0
    %264 = vmatpush1.msra.mxu0 %v147
    %265 = vmatprep.subr.mxu0 0.0
    %266 = vmatpush1.msra.mxu0 %v146
    %267 = vmatprep.subr.mxu0 0.0
    %268 = vmatpush1.msra.mxu0 %v145
    %269 = vmatprep.subr.mxu0 0.0
    %270 = vmatpush1.msra.mxu0 %v144
    %271 = vmatprep.subr.mxu0 0.0
    %272 = vmatpush2.msra.mxu0 0.0
    %273 = vmatprep.subr.mxu0 0.0
    %274 = vmatpush2.msra.mxu0 0.0
    %275 = vmatprep.subr.mxu0 0.0
    %276 = vmatpush2.msra.mxu0 0.0
    %277 = vmatprep.subr.mxu0 0.0
    %278 = vmatpush2.msra.mxu0 0.0
    %279 = vmatprep.subr.mxu0 0.0
    %280 = vmatpush2.msra.mxu0 0.0
    %281 = vmatprep.subr.mxu0 0.0
    %282 = vmatpush2.msra.mxu0 0.0
    %283 = vmatprep.subr.mxu0 0.0
    %284 = vmatpush2.msra.mxu0 0.0
    %285 = vmatprep.subr.mxu0 0.0
    %286 = vmatpush2.msra.mxu0 0.0
    %287 = vmatprep.subr.mxu0 0.0
    %288 = vmatpush2.msra.mxu0 0.0
    %289 = vmatprep.subr.mxu0 0.0
    %290 = vmatpush2.msra.mxu0 0.0
    %291 = vmatprep.subr.mxu0 0.0
    %292 = vmatpush2.msra.mxu0 0.0
    %293 = vmatprep.subr.mxu0 0.0
    %294 = vmatpush2.msra.mxu0 0.0
    %295 = vmatprep.subr.mxu0 0.0
    %296 = vmatpush2.msra.mxu0 0.0
    %297 = vmatprep.subr.mxu0 0.0
    %298 = vmatpush2.msra.mxu0 0.0
    %299 = vmatprep.subr.mxu0 0.0
    %300 = vmatpush2.msra.mxu0 0.0
    %301 = vmatprep.subr.mxu0 0.0
    %302 = vmatpush2.msra.mxu0 0.0
    %303 = vmatprep.mubr.f32.mxu0 0.0
    %304 = vmatmul.mubr.f32.gmra.mxu0 %v238
    %v305 = vpop.f32.mrf.mxu0
    %v306 = vadd.f32 %v165, %v305
    %v307 = vpop.f32.mrf.mxu0
    %308 = vdwg.mxu0
    %v309 = vmul.f32 %v306, 0.01
    %v310 = vmax.f32 %v306, %v309
    %311 = vmatprep.subr.mxu0 0.0
    %312 = vmatpush1.msra.mxu0 %v159
    %313 = vmatprep.subr.mxu0 0.0
    %314 = vmatpush1.msra.mxu0 %v158
    %315 = vmatprep.subr.mxu0 0.0
    %316 = vmatpush1.msra.mxu0 %v157
    %317 = vmatprep.subr.mxu0 0.0
    %318 = vmatpush1.msra.mxu0 %v156
    %319 = vmatprep.subr.mxu0 0.0
    %320 = vmatpush1.msra.mxu0 %v155
    %321 = vmatprep.subr.mxu0 0.0
    %322 = vmatpush1.msra.mxu0 %v154
    %323 = vmatprep.subr.mxu0 0.0
    %324 = vmatpush1.msra.mxu0 %v153
    %325 = vmatprep.subr.mxu0 0.0
    %326 = vmatpush1.msra.mxu0 %v152
    %327 = vmatprep.subr.mxu0 0.0
    %328 = vmatpush1.msra.mxu0 %v151
    %329 = vmatprep.subr.mxu0 0.0
    %330 = vmatpush1.msra.mxu0 %v150
    %331 = vmatprep.subr.mxu0 0.0
    %332 = vmatpush1.msra.mxu0 %v149
    %333 = vmatprep.subr.mxu0 0.0
    %334 = vmatpush1.msra.mxu0 %v148
    %335 = vmatprep.subr.mxu0 0.0
    %336 = vmatpush1.msra.mxu0 %v147
    %337 = vmatprep.subr.mxu0 0.0
    %338 = vmatpush1.msra.mxu0 %v146
    %339 = vmatprep.subr.mxu0 0.0
    %340 = vmatpush1.msra.mxu0 %v145
    %341 = vmatprep.subr.mxu0 0.0
    %342 = vmatpush1.msra.mxu0 %v144
    %343 = vmatprep.subr.mxu0 0.0
    %344 = vmatpush2.msra.mxu0 0.0
    %345 = vmatprep.subr.mxu0 0.0
    %346 = vmatpush2.msra.mxu0 0.0
    %347 = vmatprep.subr.mxu0 0.0
    %348 = vmatpush2.msra.mxu0 0.0
    %349 = vmatprep.subr.mxu0 0.0
    %350 = vmatpush2.msra.mxu0 0.0
    %351 = vmatprep.subr.mxu0 0.0
    %352 = vmatpush2.msra.mxu0 0.0
    %353 = vmatprep.subr.mxu0 0.0
    %354 = vmatpush2.msra.mxu0 0.0
    %355 = vmatprep.subr.mxu0 0.0
    %356 = vmatpush2.msra.mxu0 0.0
    %357 = vmatprep.subr.mxu0 0.0
    %358 = vmatpush2.msra.mxu0 0.0
    %359 = vmatprep.subr.mxu0 0.0
    %360 = vmatpush2.msra.mxu0 0.0
    %361 = vmatprep.subr.mxu0 0.0
    %362 = vmatpush2.msra.mxu0 0.0
    %363 = vmatprep.subr.mxu0 0.0
    %364 = vmatpush2.msra.mxu0 0.0
    %365 = vmatprep.subr.mxu0 0.0
    %366 = vmatpush2.msra.mxu0 0.0
    %367 = vmatprep.subr.mxu0 0.0
    %368 = vmatpush2.msra.mxu0 0.0
    %369 = vmatprep.subr.mxu0 0.0
    %370 = vmatpush2.msra.mxu0 0.0
    %371 = vmatprep.subr.mxu0 0.0
    %372 = vmatpush2.msra.mxu0 0.0
    %373 = vmatprep.subr.mxu0 0.0
    %374 = vmatpush2.msra.mxu0 0.0
    %375 = vmatprep.mubr.f32.mxu0 0.0
    %376 = vmatmul.mubr.f32.gmra.mxu0 %v310
    %v377 = vpop.f32.mrf.mxu0
    %v378 = vadd.f32 %v165, %v377
    %v379 = vpop.f32.mrf.mxu0
    %380 = vdwg.mxu0
    %v381 = vmul.f32 %v378, 0.01
    %v382 = vmax.f32 %v378, %v381
    %v383 = vld [vmem:[#allocation5] sm:$0xff]
    %v384 = vld [vmem:[#allocation5 + $0x8] sm:$0xff]
    %v385 = vld [vmem:[#allocation5 + $0x10] sm:$0xff]
    %v386 = vld [vmem:[#allocation5 + $0x18] sm:$0xff]
    %v387 = vld [vmem:[#allocation5 + $0x20] sm:$0xff]
    %v388 = vld [vmem:[#allocation5 + $0x28] sm:$0xff]
    %v389 = vld [vmem:[#allocation5 + $0x30] sm:$0xff]
    %v390 = vld [vmem:[#allocation5 + $0x38] sm:$0xff]
    %v391 = vld [vmem:[#allocation5 + $0x40] sm:$0xff]
    %v392 = vld [vmem:[#allocation5 + $0x48] sm:$0xff]
    %v393 = vld [vmem:[#allocation5 + $0x50] sm:$0xff]
    %v394 = vld [vmem:[#allocation5 + $0x58] sm:$0xff]
    %v395 = vld [vmem:[#allocation5 + $0x60] sm:$0xff]
    %v396 = vld [vmem:[#allocation5 + $0x68] sm:$0xff]
    %v397 = vld [vmem:[#allocation5 + $0x70] sm:$0xff]
    %v398 = vld [vmem:[#allocation5 + $0x78] sm:$0xff]
    %v399 = vld [vmem:[%s6] sm:$0x1]
    %v401 = vlaneseq
    %v402 = vshrl.u32 %v401, 7
    %v403 = vsub.s32 0, %v402
    %v404 = vrot.slane %v399, %v403
    %406 = vmatprep.subr.mxu0 0.0
    %407 = vmatpush1.msra.mxu0 %v398
    %408 = vmatprep.subr.mxu0 0.0
    %409 = vmatpush1.msra.mxu0 %v397
    %410 = vmatprep.subr.mxu0 0.0
    %411 = vmatpush1.msra.mxu0 %v396
    %412 = vmatprep.subr.mxu0 0.0
    %413 = vmatpush1.msra.mxu0 %v395
    %414 = vmatprep.subr.mxu0 0.0
    %415 = vmatpush1.msra.mxu0 %v394
    %416 = vmatprep.subr.mxu0 0.0
    %417 = vmatpush1.msra.mxu0 %v393
    %418 = vmatprep.subr.mxu0 0.0
    %419 = vmatpush1.msra.mxu0 %v392
    %420 = vmatprep.subr.mxu0 0.0
    %421 = vmatpush1.msra.mxu0 %v391
    %422 = vmatprep.subr.mxu0 0.0
    %423 = vmatpush1.msra.mxu0 %v390
    %424 = vmatprep.subr.mxu0 0.0
    %425 = vmatpush1.msra.mxu0 %v389
    %426 = vmatprep.subr.mxu0 0.0
    %427 = vmatpush1.msra.mxu0 %v388
    %428 = vmatprep.subr.mxu0 0.0
    %429 = vmatpush1.msra.mxu0 %v387
    %430 = vmatprep.subr.mxu0 0.0
    %431 = vmatpush1.msra.mxu0 %v386
    %432 = vmatprep.subr.mxu0 0.0
    %433 = vmatpush1.msra.mxu0 %v385
    %434 = vmatprep.subr.mxu0 0.0
    %435 = vmatpush1.msra.mxu0 %v384
    %436 = vmatprep.subr.mxu0 0.0
    %437 = vmatpush1.msra.mxu0 %v383
    %438 = vmatprep.subr.mxu0 0.0
    %439 = vmatpush2.msra.mxu0 0.0
    %440 = vmatprep.subr.mxu0 0.0
    %441 = vmatpush2.msra.mxu0 0.0
    %442 = vmatprep.subr.mxu0 0.0
    %443 = vmatpush2.msra.mxu0 0.0
    %444 = vmatprep.subr.mxu0 0.0
    %445 = vmatpush2.msra.mxu0 0.0
    %446 = vmatprep.subr.mxu0 0.0
    %447 = vmatpush2.msra.mxu0 0.0
    %448 = vmatprep.subr.mxu0 0.0
    %449 = vmatpush2.msra.mxu0 0.0
    %450 = vmatprep.subr.mxu0 0.0
    %451 = vmatpush2.msra.mxu0 0.0
    %452 = vmatprep.subr.mxu0 0.0
    %453 = vmatpush2.msra.mxu0 0.0
    %454 = vmatprep.subr.mxu0 0.0
    %455 = vmatpush2.msra.mxu0 0.0
    %456 = vmatprep.subr.mxu0 0.0
    %457 = vmatpush2.msra.mxu0 0.0
    %458 = vmatprep.subr.mxu0 0.0
    %459 = vmatpush2.msra.mxu0 0.0
    %460 = vmatprep.subr.mxu0 0.0
    %461 = vmatpush2.msra.mxu0 0.0
    %462 = vmatprep.subr.mxu0 0.0
    %463 = vmatpush2.msra.mxu0 0.0
    %464 = vmatprep.subr.mxu0 0.0
    %465 = vmatpush2.msra.mxu0 0.0
    %466 = vmatprep.subr.mxu0 0.0
    %467 = vmatpush2.msra.mxu0 0.0
    %468 = vmatprep.subr.mxu0 0.0
    %469 = vmatpush2.msra.mxu0 0.0
    %470 = vmatprep.mubr.f32.mxu0 0.0
    %471 = vmatmul.mubr.f32.gmra.mxu0 %v382
    %v472 = vpop.f32.mrf.mxu0
    %v473 = vadd.f32 %v404, %v472
    %v474 = vpop.f32.mrf.mxu0
    %475 = vdwg.mxu0
    %476 = vst [vmem:[#allocation7] sm:$0xff] %v473
    // Predicated region
    $region38: #{tpu_custom_call.1} parent=1 // pred_check
      _
    $region39: #{tpu_custom_call.1} parent=1 // pred_check_branch
      %478 = sbr.rel (0) target = $region41
    $region40: #{tpu_custom_call.1} parent=1 // pred_region
      %s480 = ssub.s32 128, 128
      %481 = vsyncadd [#allocation4], %s480
      %s483 = sshll.u32 [#allocation7], 4
      %s484 = int_to_ptr.vmem [resolvable:$true] %s483
      %486 = dma.vmem_to_hbm [thread:$0]  %s484, 128, %s7, [#allocation4]
    $region41: #{tpu_custom_call.1} parent=1 // pred_fallthru
      _
    // Predicated region
    $region42: #{tpu_custom_call.1} parent=1 // pred_check
      _
    $region43: #{tpu_custom_call.1} parent=1 // pred_check_branch
      %488 = sbr.rel (0) target = $region45
    $region44: #{tpu_custom_call.1} parent=1 // pred_region
      %489 = dma.done [#allocation4], 128
    $region45: #{tpu_custom_call.1} parent=1 // pred_fallthru
      _
    %490 = vsyncpa [#allocation3], 1
    %491 = vsyncpa [#allocation6], 1
    %492 = vsyncpa [#allocation4], 1

</llo_original>
